<compile_context>
chip_gen: v7x
topology: tpu7x:2x2x1
jax: 0.10.0
libtpu: 0.0.40
codegen_flags: <defaults>
</compile_context>

<pallas_src>
import functools

import jax
import jax.numpy as jnp
from jax import lax
from jax.experimental import pallas as pl
from jax.experimental.pallas import tpu as pltpu


# Model dims matching the PyTorch module's head/fc.
EMB = 128          # replaced swin head: Linear(n_features, 128)
HID = 64           # fc[0]: Linear(128 + num_dense, 64)
OUT = 1            # fc[2]: Linear(64, 1)


# ----------------------------- Pallas kernels --------------------------------
def petnet_fused_kernel(img_ref, wbt_ref, dense_ref,
                        wfold_ref, w1d_ref, bfold_ref, w2_ref, b2_ref,
                        out_ref, acc_ref):
    """K-tiled streaming backbone matmul + fused (folded) head/fc epilogue."""
    k = pl.program_id(0)

    @pl.when(k == 0)
    def _init():
        acc_ref[...] = jnp.zeros_like(acc_ref)

    # Streamed stand-in backbone: acc[B, F] += img_blk[B, tk] @ wbt_blk[F, tk]^T.
    # Contracting rhs dim 1 is the MXU-native transposed-RHS path (no vxpose);
    # image cast f32 -> bf16 on the VPU (hidden under DMA), f32 accumulation.
    acc_ref[...] += lax.dot_general(
        img_ref[...].astype(jnp.bfloat16), wbt_ref[...],
        dimension_numbers=(((1,), (1,)), ((), ())),
        preferred_element_type=jnp.float32)

    @pl.when(k == pl.num_programs(0) - 1)
    def _epilogue():
        feats = acc_ref[...]                                   # [B, F] f32
        dense = dense_ref[...]                                 # [B, ND] f32
        # Folded eval-mode chain:
        #   ((feats + bb) @ wh + bh) -> dropout(identity) -> cat(dense) -> fc[0]
        # == feats @ (wh @ w1x) + dense @ w1d + (bb @ wh @ w1x + bh @ w1x + b1)
        h = (jnp.dot(feats, wfold_ref[...], preferred_element_type=jnp.float32)
             + jnp.dot(dense, w1d_ref[...], preferred_element_type=jnp.float32)
             + bfold_ref[...])                                 # [B, HID]
        h = jnp.maximum(h, 0.0)                                # ReLU
        out_ref[...] = (jnp.dot(h, w2_ref[...],
                                preferred_element_type=jnp.float32)
                        + b2_ref[...])                         # [B, OUT]


def petnet_partial_kernel(img_ref, wbt_ref, part_ref, acc_ref):
    """K-split variant: each 'parallel' slot (TensorCore on v7x) reduces its
    contiguous slice of K and writes a partial [B, F] sum; epilogue is in XLA."""
    k = pl.program_id(1)

    @pl.when(k == 0)
    def _init():
        acc_ref[...] = jnp.zeros_like(acc_ref)

    acc_ref[...] += lax.dot_general(
        img_ref[...].astype(jnp.bfloat16), wbt_ref[...],
        dimension_numbers=(((1,), (1,)), ((), ())),
        preferred_element_type=jnp.float32)

    @pl.when(k == pl.num_programs(1) - 1)
    def _write():
        part_ref[...] = acc_ref[...]


# ------------------------------ tile selection --------------------------------
def _auto_tk(chw, bytes_per_k, budget_bytes=24 * 1024 * 1024, hard_cap=65536):
    """Largest multiple-of-128 divisor of chw whose double-buffered streams fit
    the VMEM budget (cap ~64K keeps v7x's 64 MiB ceiling safe)."""
    cap = min(hard_cap, budget_bytes // max(bytes_per_k, 1))
    cap = max(128, (cap // 128) * 128)
    if chw % 128 != 0:
        # Ragged fallback (pads); never hit for the real 3x384x384 input.
        return min(cap, ((chw + 127) // 128) * 128)
    for mult in range(min(cap, chw) // 128, 0, -1):
        t = mult * 128
        if chw % t == 0:
            return t
    return 128


# ------------------------------- wrapper -------------------------------------
@functools.partial(jax.jit, static_argnames=("tk", "k_splits"))
def petnet_forward(image, dense, params, *, tk=None, k_splits=1):
    """Forward pass.

    tk: K tile (multiple of 128). Default None auto-selects the largest
        multiple-of-128 divisor of CHW fitting the VMEM budget (real 3x384x384
        input -> tk=55296, 8 grid steps). Keep <= ~64K so 32 MiB VMEM limit
        holds on all chip generations (v7x has only 64 MiB physical).
    k_splits: split the K reduction across this many 'parallel' grid slots.
        Set 2 on v7x to use both TensorCores; leave 1 on single-TC v5e/v6e.
    """
    wbt, bb, wh, bh, w1x, w1d, b1, w2, b2 = params
    B = image.shape[0]
    F = wbt.shape[0]
    ND = dense.shape[1]

    # --- parameter folding (valid because Dropout(0.2) is identity in eval) ---
    wfold = (wh @ w1x).astype(jnp.float32)                         # [F, HID]
    bfold = (bb @ wh @ w1x + bh @ w1x + b1).astype(jnp.float32)    # [1, HID]

    # --- streamed operands: flatten NCHW row-major (== torch .view).
    # Image stays f32 (cast to bf16 inside the kernel); weight is already bf16
    # from init_params (the astype below is a no-op guard).
    img_flat = image.reshape(B, -1).astype(jnp.float32)            # [B, CHW]
    wbt_bf16 = wbt.astype(jnp.bfloat16)                            # [F, CHW]
    dense_f32 = dense.astype(jnp.float32)

    chw = img_flat.shape[1]
    bytes_per_k = 2 * (B * 4 + F * 2)      # double-buffered f32 img + bf16 wgt
    if tk is None:
        tk = _auto_tk(chw, bytes_per_k)

    n_k = pl.cdiv(chw, tk)
    chw_pad = n_k * tk
    if chw_pad != chw:
        # Off the hot path: auto tk divides CHW exactly for the target model,
        # so this per-call pad is only a fallback for odd explicit tk choices.
        img_flat = jnp.pad(img_flat, ((0, 0), (0, chw_pad - chw)))
        wbt_bf16 = jnp.pad(wbt_bf16, ((0, 0), (0, chw_pad - chw)))

    # Clamp k_splits to a divisor of the number of K tiles.
    while n_k % k_splits:
        k_splits -= 1

    matmul_flops = 2 * B * chw_pad * F
    epilogue_flops = 2 * B * F * HID + 2 * B * ND * HID + 2 * B * HID * OUT

    if k_splits == 1:
        # Small params: full-array blocks, constant block index across the grid
        # -> DMA'd once and kept resident in VMEM.
        resident = lambda shape: pl.BlockSpec(shape, lambda k: (0, 0))
        cost = pl.CostEstimate(
            flops=matmul_flops + epilogue_flops,
            transcendentals=0,
            bytes_accessed=int(img_flat.size * 4 + wbt_bf16.size * 2
                               + (dense_f32.size + wfold.size + bfold.size
                                  + w1d.size + w2.size + b2.size + B * OUT) * 4))
        return pl.pallas_call(
            petnet_fused_kernel,
            out_shape=jax.ShapeDtypeStruct((B, OUT), jnp.float32),
            grid_spec=pltpu.PrefetchScalarGridSpec(
                num_scalar_prefetch=0,
                grid=(n_k,),
                in_specs=[
                    pl.BlockSpec((B, tk), lambda k: (0, k)),   # streamed image tile (f32)
                    pl.BlockSpec((F, tk), lambda k: (0, k)),   # streamed weight tile (bf16)
                    resident((B, ND)),                         # dense features
                    resident((F, HID)),                        # folded head+fc[0] weight
                    resident((ND, HID)),                       # fc[0] dense-part weight
                    resident((1, HID)),                        # folded bias
                    resident((HID, OUT)),                      # fc[2] weight
                    resident((1, OUT)),                        # fc[2] bias
                ],
                out_specs=pl.BlockSpec((B, OUT), lambda k: (0, 0)),
                scratch_shapes=[pltpu.VMEM((B, F), jnp.float32)],   # f32 accumulator
            ),
            compiler_params=pltpu.CompilerParams(
                dimension_semantics=("arbitrary",),            # K is a reduction
                vmem_limit_bytes=32 * 1024 * 1024,             # holds on v5e/v6e/v7x at tk<=64K
            ),
            cost_estimate=cost,
        )(img_flat, wbt_bf16, dense_f32, wfold, w1d, bfold, w2, b2)

    # ---------------- k_splits >= 2: per-core partial sums + XLA epilogue ----
    nkp = n_k // k_splits
    cost = pl.CostEstimate(
        flops=matmul_flops,
        transcendentals=0,
        bytes_accessed=int(img_flat.size * 4 + wbt_bf16.size * 2
                           + k_splits * B * F * 4))
    partials = pl.pallas_call(
        petnet_partial_kernel,
        out_shape=jax.ShapeDtypeStruct((k_splits, B, F), jnp.float32),
        grid_spec=pltpu.PrefetchScalarGridSpec(
            num_scalar_prefetch=0,
            grid=(k_splits, nkp),
            in_specs=[
                pl.BlockSpec((B, tk), lambda s, k: (0, s * nkp + k)),
                pl.BlockSpec((F, tk), lambda s, k: (0, s * nkp + k)),
            ],
            out_specs=pl.BlockSpec((None, B, F), lambda s, k: (s, 0, 0)),
            scratch_shapes=[pltpu.VMEM((B, F), jnp.float32)],
        ),
        compiler_params=pltpu.CompilerParams(
            dimension_semantics=("parallel", "arbitrary"),     # split across TCs on v7x
            vmem_limit_bytes=32 * 1024 * 1024,
        ),
        cost_estimate=cost,
    )(img_flat, wbt_bf16)

    feats = jnp.sum(partials, axis=0)                              # [B, F]
    h = jnp.maximum(feats @ wfold + dense_f32 @ w1d + bfold, 0.0)  # [B, HID]
    return h @ w2 + b2                                             # [B, OUT]


# ------------------------------- params --------------------------------------
def init_params(key, chw, n_features=32, num_dense=12, emb=EMB, hid=HID, out=OUT):
    ks = jax.random.split(key, 9)
    scale = lambda fan_in: 1.0 / jnp.sqrt(jnp.float32(fan_in))
    # Stand-in backbone weight stored TRANSPOSED [F, CHW] (lane-dense K
    # streaming) and pre-cast to bf16 ONCE here (no per-call cast of ~big wgt).
    wbt = (jax.random.normal(ks[0], (n_features, chw), jnp.float32)
           * scale(chw)).astype(jnp.bfloat16)
    bb = jax.random.normal(ks[1], (1, n_features), jnp.float32) * 0.01
    wh = jax.random.normal(ks[2], (n_features, emb), jnp.float32) * scale(n_features)
    bh = jax.random.normal(ks[3], (1, emb), jnp.float32) * 0.01
    w1x = jax.random.normal(ks[4], (emb, hid), jnp.float32) * scale(emb + num_dense)
    w1d = jax.random.normal(ks[5], (num_dense, hid), jnp.float32) * scale(emb + num_dense)
    b1 = jax.random.normal(ks[6], (1, hid), jnp.float32) * 0.01
    w2 = jax.random.normal(ks[7], (hid, out), jnp.float32) * scale(hid)
    b2 = jax.random.normal(ks[8], (1, out), jnp.float32) * 0.01
    return (wbt, bb, wh, bh, w1x, w1d, b1, w2, b2)


def reference_forward(image, dense, params):
    """Pure-JAX reference (unfolded, module-shaped). Uses the same bf16 cast on
    the streamed backbone operands as the kernel path; everything else f32."""
    wbt, bb, wh, bh, w1x, w1d, b1, w2, b2 = params
    B = image.shape[0]
    x = image.reshape(B, -1).astype(jnp.bfloat16)
    feats = lax.dot_general(x, wbt.astype(jnp.bfloat16),
                            dimension_numbers=(((1,), (1,)), ((), ())),
                            preferred_element_type=jnp.float32) + bb
    emb = feats @ wh + bh            # replaced head; dropout(0.2) identity in eval
    h = jnp.maximum(emb @ w1x + dense.astype(jnp.float32) @ w1d + b1, 0.0)
    return h @ w2 + b2


if __name__ == "__main__":
    key = jax.random.PRNGKey(0)
    k_img, k_dense, k_par = jax.random.split(key, 3)

    B, C, H, W = 8, 3, 16, 16          # small stand-in for (16, 3, 384, 384)
    NUM_DENSE = 12                     # len(params['dense_features'])

    image = jax.random.normal(k_img, (B, C, H, W), jnp.float32)
    dense = jax.random.normal(k_dense, (B, NUM_DENSE), jnp.float32)
    params = init_params(k_par, C * H * W, num_dense=NUM_DENSE)

    ref = reference_forward(image, dense, params)

    # 1) auto tk (single step at this toy size; tk=55296 / 8 steps at real size)
    out_auto = jax.block_until_ready(petnet_forward(image, dense, params))
    # 2) explicit multi-step fused path (exercises the streaming accumulator)
    out_tiled = jax.block_until_ready(petnet_forward(image, dense, params, tk=256))
    # 3) v7x-style 2-way K split (runs serially but correctly on 1-TC chips)
    out_split = jax.block_until_ready(
        petnet_forward(image, dense, params, tk=128, k_splits=2))

    for out in (out_auto, out_tiled, out_split):
        assert out.shape == (B, 1), out.shape
        assert jnp.allclose(out, ref, atol=2e-2, rtol=2e-2), "mismatch vs reference"

    print("KERNEL_OK")
</pallas_src>

<mosaic_0001>
module attributes {stable_mosaic.version = 11 : i64} {
  func.func @petnet_fused_kernel(%arg0: i32, %arg1: memref<8x768xf32, #tpu.memory_space<vmem>>, %arg2: memref<32x768xbf16, #tpu.memory_space<vmem>>, %arg3: memref<8x12xf32, #tpu.memory_space<vmem>>, %arg4: memref<32x64xf32, #tpu.memory_space<vmem>>, %arg5: memref<12x64xf32, #tpu.memory_space<vmem>>, %arg6: memref<1x64xf32, #tpu.memory_space<vmem>>, %arg7: memref<64x1xf32, #tpu.memory_space<vmem>>, %arg8: memref<1x1xf32, #tpu.memory_space<vmem>>, %arg9: memref<8x1xf32, #tpu.memory_space<vmem>>, %arg10: memref<8x32xf32, #tpu.memory_space<vmem>>) attributes {dimension_semantics = [#tpu.dimension_semantics<arbitrary>], iteration_bounds = array<i64: 1>, scalar_prefetch = 0 : i64, scratch_operands = 1 : i64, tpu.core_type = #tpu.core_type<tc>, window_params = [{transform_indices = @transform_0, window_bounds = array<i64: 8, 768>}, {transform_indices = @transform_1, window_bounds = array<i64: 32, 768>}, {pipeline_mode = #tpu.pipeline_mode<synchronous>, transform_indices = @transform_2, window_bounds = array<i64: 8, 12>}, {pipeline_mode = #tpu.pipeline_mode<synchronous>, transform_indices = @transform_3, window_bounds = array<i64: 32, 64>}, {pipeline_mode = #tpu.pipeline_mode<synchronous>, transform_indices = @transform_4, window_bounds = array<i64: 12, 64>}, {pipeline_mode = #tpu.pipeline_mode<synchronous>, transform_indices = @transform_5, window_bounds = array<i64: 1, 64>}, {pipeline_mode = #tpu.pipeline_mode<synchronous>, transform_indices = @transform_6, window_bounds = array<i64: 64, 1>}, {pipeline_mode = #tpu.pipeline_mode<synchronous>, transform_indices = @transform_7, window_bounds = array<i64: 1, 1>}, {pipeline_mode = #tpu.pipeline_mode<synchronous>, transform_indices = @transform_8, window_bounds = array<i64: 8, 1>}]} {
    %c0_i32 = arith.constant 0 : i32
    %0 = arith.cmpi eq, %arg0, %c0_i32 : i32
    %1 = arith.extui %0 : i1 to i32
    %c0_i32_0 = arith.constant 0 : i32
    %2 = arith.cmpi ne, %1, %c0_i32_0 : i32
    scf.if %2 {
      %cst_10 = arith.constant 0.000000e+00 : f32
      %13 = vector.broadcast %cst_10 : f32 to vector<8x32xf32>
      %c0_11 = arith.constant 0 : index
      %c0_12 = arith.constant 0 : index
      %14 = vector.load %arg10[%c0_11, %c0_12] : memref<8x32xf32, #tpu.memory_space<vmem>>, vector<8x32xf32>
      tpu.vector_store %arg10[%c0_11, %c0_12], %13 {strides = array<i32>} : memref<8x32xf32, #tpu.memory_space<vmem>>, vector<8x32xf32>,
    } else {
    }
    %c0 = arith.constant 0 : index
    %c0_1 = arith.constant 0 : index
    %3 = vector.load %arg10[%c0, %c0_1] : memref<8x32xf32, #tpu.memory_space<vmem>>, vector<8x32xf32>
    %c0_2 = arith.constant 0 : index
    %c0_3 = arith.constant 0 : index
    %4 = vector.load %arg1[%c0_2, %c0_3] : memref<8x768xf32, #tpu.memory_space<vmem>>, vector<8x768xf32>
    %5 = arith.truncf %4 : vector<8x768xf32> to vector<8x768xbf16>
    %c0_4 = arith.constant 0 : index
    %c0_5 = arith.constant 0 : index
    %6 = vector.load %arg2[%c0_4, %c0_5] : memref<32x768xbf16, #tpu.memory_space<vmem>>, vector<32x768xbf16>
    %cst = arith.constant dense<0.000000e+00> : vector<8x32xf32>
    %7 = tpu.matmul %5, %6, %cst {dimension_numbers = #tpu.dot_dimension_numbers<[1], [1], [0], [0], [0, 0, 1, 0], [], []>} : vector<8x768xbf16>, vector<32x768xbf16>, vector<8x32xf32> -> vector<8x32xf32>
    %8 = arith.addf %3, %7 : vector<8x32xf32>
    %c0_6 = arith.constant 0 : index
    %c0_7 = arith.constant 0 : index
    %9 = vector.load %arg10[%c0_6, %c0_7] : memref<8x32xf32, #tpu.memory_space<vmem>>, vector<8x32xf32>
    tpu.vector_store %arg10[%c0_6, %c0_7], %8 {strides = array<i32>} : memref<8x32xf32, #tpu.memory_space<vmem>>, vector<8x32xf32>,
    %c0_i32_8 = arith.constant 0 : i32
    %10 = arith.cmpi eq, %arg0, %c0_i32_8 : i32
    %11 = arith.extui %10 : i1 to i32
    %c0_i32_9 = arith.constant 0 : i32
    %12 = arith.cmpi ne, %11, %c0_i32_9 : i32
    scf.if %12 {
      %c0_10 = arith.constant 0 : index
      %c0_11 = arith.constant 0 : index
      %13 = vector.load %arg10[%c0_10, %c0_11] : memref<8x32xf32, #tpu.memory_space<vmem>>, vector<8x32xf32>
      %c0_12 = arith.constant 0 : index
      %c0_13 = arith.constant 0 : index
      %14 = vector.load %arg3[%c0_12, %c0_13] : memref<8x12xf32, #tpu.memory_space<vmem>>, vector<8x12xf32>
      %c0_14 = arith.constant 0 : index
      %c0_15 = arith.constant 0 : index
      %15 = vector.load %arg4[%c0_14, %c0_15] : memref<32x64xf32, #tpu.memory_space<vmem>>, vector<32x64xf32>
      %cst_16 = arith.constant dense<0.000000e+00> : vector<8x64xf32>
      %16 = tpu.matmul %13, %15, %cst_16 {dimension_numbers = #tpu.dot_dimension_numbers<[1], [0], [0], [1], [0, 0, 1, 1], [], []>} : vector<8x32xf32>, vector<32x64xf32>, vector<8x64xf32> -> vector<8x64xf32>
      %c0_17 = arith.constant 0 : index
      %c0_18 = arith.constant 0 : index
      %17 = vector.load %arg5[%c0_17, %c0_18] : memref<12x64xf32, #tpu.memory_space<vmem>>, vector<12x64xf32>
      %cst_19 = arith.constant dense<0.000000e+00> : vector<8x64xf32>
      %18 = tpu.matmul %14, %17, %cst_19 {dimension_numbers = #tpu.dot_dimension_numbers<[1], [0], [0], [1], [0, 0, 1, 1], [], []>} : vector<8x12xf32>, vector<12x64xf32>, vector<8x64xf32> -> vector<8x64xf32>
      %19 = arith.addf %16, %18 : vector<8x64xf32>
      %c0_20 = arith.constant 0 : index
      %c0_21 = arith.constant 0 : index
      %20 = vector.load %arg6[%c0_20, %c0_21] : memref<1x64xf32, #tpu.memory_space<vmem>>, vector<1x64xf32>
      %21 = vector.broadcast %20 : vector<1x64xf32> to vector<8x64xf32>
      %22 = arith.addf %19, %21 : vector<8x64xf32>
      %cst_22 = arith.constant 0.000000e+00 : f32
      %23 = vector.broadcast %cst_22 : f32 to vector<8x64xf32>
      %24 = arith.maximumf %22, %23 : vector<8x64xf32>
      %c0_23 = arith.constant 0 : index
      %c0_24 = arith.constant 0 : index
      %25 = vector.load %arg7[%c0_23, %c0_24] : memref<64x1xf32, #tpu.memory_space<vmem>>, vector<64x1xf32>
      %cst_25 = arith.constant dense<0.000000e+00> : vector<8x1xf32>
      %26 = tpu.matmul %24, %25, %cst_25 {dimension_numbers = #tpu.dot_dimension_numbers<[1], [0], [0], [1], [0, 0, 1, 1], [], []>} : vector<8x64xf32>, vector<64x1xf32>, vector<8x1xf32> -> vector<8x1xf32>
      %c0_26 = arith.constant 0 : index
      %c0_27 = arith.constant 0 : index
      %27 = vector.load %arg8[%c0_26, %c0_27] : memref<1x1xf32, #tpu.memory_space<vmem>>, vector<1x1xf32>
      %28 = vector.broadcast %27 : vector<1x1xf32> to vector<8x1xf32>
      %29 = arith.addf %26, %28 : vector<8x1xf32>
      %c0_28 = arith.constant 0 : index
      %c0_29 = arith.constant 0 : index
      %30 = vector.load %arg9[%c0_28, %c0_29] : memref<8x1xf32, #tpu.memory_space<vmem>>, vector<8x1xf32>
      tpu.vector_store %arg9[%c0_28, %c0_29], %29 {strides = array<i32>} : memref<8x1xf32, #tpu.memory_space<vmem>>, vector<8x1xf32>,
    } else {
    }
    return
  }
  func.func @transform_0(%arg0: i32) -> (i32, i32) {
    %c0_i32 = arith.constant 0 : i32
    %c0_i32_0 = arith.constant 0 : i32
    return %c0_i32, %arg0 : i32, i32
  }
  func.func @transform_1(%arg0: i32) -> (i32, i32) {
    %c0_i32 = arith.constant 0 : i32
    %c0_i32_0 = arith.constant 0 : i32
    return %c0_i32, %arg0 : i32, i32
  }
  func.func @transform_2(%arg0: i32) -> (i32, i32) {
    %c0_i32 = arith.constant 0 : i32
    %c0_i32_0 = arith.constant 0 : i32
    %c0_i32_1 = arith.constant 0 : i32
    return %c0_i32, %c0_i32_0 : i32, i32
  }
  func.func @transform_3(%arg0: i32) -> (i32, i32) {
    %c0_i32 = arith.constant 0 : i32
    %c0_i32_0 = arith.constant 0 : i32
    %c0_i32_1 = arith.constant 0 : i32
    return %c0_i32, %c0_i32_0 : i32, i32
  }
  func.func @transform_4(%arg0: i32) -> (i32, i32) {
    %c0_i32 = arith.constant 0 : i32
    %c0_i32_0 = arith.constant 0 : i32
    %c0_i32_1 = arith.constant 0 : i32
    return %c0_i32, %c0_i32_0 : i32, i32
  }
  func.func @transform_5(%arg0: i32) -> (i32, i32) {
    %c0_i32 = arith.constant 0 : i32
    %c0_i32_0 = arith.constant 0 : i32
    %c0_i32_1 = arith.constant 0 : i32
    return %c0_i32, %c0_i32_0 : i32, i32
  }
  func.func @transform_6(%arg0: i32) -> (i32, i32) {
    %c0_i32 = arith.constant 0 : i32
    %c0_i32_0 = arith.constant 0 : i32
    %c0_i32_1 = arith.constant 0 : i32
    return %c0_i32, %c0_i32_0 : i32, i32
  }
  func.func @transform_7(%arg0: i32) -> (i32, i32) {
    %c0_i32 = arith.constant 0 : i32
    %c0_i32_0 = arith.constant 0 : i32
    %c0_i32_1 = arith.constant 0 : i32
    return %c0_i32, %c0_i32_0 : i32, i32
  }
  func.func @transform_8(%arg0: i32) -> (i32, i32) {
    %c0_i32 = arith.constant 0 : i32
    %c0_i32_0 = arith.constant 0 : i32
    %c0_i32_1 = arith.constant 0 : i32
    return %c0_i32, %c0_i32_0 : i32, i32
  }
}

</mosaic_0001>

<llo_original>
// kernel: petnet_forward.1
$region0: #{petnet_forward.1}
  #allocation0 [shape = 'u32[]', space=smem, size = 0x4, offset = 0x4, fixed_abs, tag = 'smem constant byte address 0x4 - core index']
  #allocation1 [shape = 'u32[144,128]{1,0:T(1,128)}', space=vmem, size = 0x12000, scoped, tag = 'internal scratch']
  #allocation2 [shape = 'f32[8,32]{1,0:T(8,128)}', space=vmem, size = 0x1000, scoped, tag = 'scratch operand']
  #allocation3 [shape = 'f32[1,1]{1,0:T(1,128)S(1)}', space=vmem, size = 0x200, scoped, tag = 'scoped memory for petnet_forward.1']
  %s0 = inlined_call_operand.vmem [shape: f32[8,768], index: 0, kind: input, shape index: {}]
  %s1 = inlined_call_operand.vmem [shape: bf16[32,768], index: 1, kind: input, shape index: {}]
  %s2 = inlined_call_operand.vmem [shape: f32[8,12], index: 2, kind: input, shape index: {}]
  %s3 = inlined_call_operand.vmem [shape: f32[32,64], index: 3, kind: input, shape index: {}]
  %s4 = inlined_call_operand.vmem [shape: f32[12,64], index: 4, kind: input, shape index: {}]
  %s5 = inlined_call_operand.vmem [shape: f32[1,64], index: 5, kind: input, shape index: {}]
  %s6 = inlined_call_operand.vmem [shape: f32[64,1], index: 6, kind: input, shape index: {}]
  %s7 = inlined_call_operand.<no memory space> [shape: f32[1,1], index: 7, kind: input, shape index: {}]
  %s8 = inlined_call_operand.vmem [shape: f32[8,1], index: 8, kind: output, shape index: {}]
  %s9 = sld [smem:[#allocation0]]
  $region50: #{petnet_forward.1} parent=0
    _
  %s11 = ssub.s32 1, %s9
  %s12 = scalar_select 0, %s11, %s9
  %v13 = vstv %s7
  %14 = vst [vmem:[#allocation3] sm:$0x1] %v13
  // Predicated region
  $region2: #{petnet_forward.1} parent=0 // pred_check
    _
  $region3: #{petnet_forward.1} parent=0 // pred_check_branch
    %16 = sbr.rel (0) target = $region5
  $region4: #{petnet_forward.1} parent=0 // pred_region
    _
  $region5: #{petnet_forward.1} parent=0 // pred_fallthru
    _
  // Predicated region
  $region6: #{petnet_forward.1} parent=0 // pred_check
    _
  $region7: #{petnet_forward.1} parent=0 // pred_check_branch
    %18 = sbr.rel (0) target = $region9
  $region8: #{petnet_forward.1} parent=0 // pred_region
    _
  $region9: #{petnet_forward.1} parent=0 // pred_fallthru
    _
  // Predicated region
  $region10: #{petnet_forward.1} parent=0 // pred_check
    _
  $region11: #{petnet_forward.1} parent=0 // pred_check_branch
    %20 = sbr.rel (0) target = $region13
  $region12: #{petnet_forward.1} parent=0 // pred_region
    _
  $region13: #{petnet_forward.1} parent=0 // pred_fallthru
    _
  // Predicated region
  $region14: #{petnet_forward.1} parent=0 // pred_check
    _
  $region15: #{petnet_forward.1} parent=0 // pred_check_branch
    %22 = sbr.rel (0) target = $region17
  $region16: #{petnet_forward.1} parent=0 // pred_region
    _
  $region17: #{petnet_forward.1} parent=0 // pred_fallthru
    _
  // Predicated region
  $region18: #{petnet_forward.1} parent=0 // pred_check
    _
  $region19: #{petnet_forward.1} parent=0 // pred_check_branch
    %24 = sbr.rel (0) target = $region21
  $region20: #{petnet_forward.1} parent=0 // pred_region
    _
  $region21: #{petnet_forward.1} parent=0 // pred_fallthru
    _
  // Predicated region
  $region22: #{petnet_forward.1} parent=0 // pred_check
    _
  $region23: #{petnet_forward.1} parent=0 // pred_check_branch
    %26 = sbr.rel (0) target = $region25
  $region24: #{petnet_forward.1} parent=0 // pred_region
    _
  $region25: #{petnet_forward.1} parent=0 // pred_fallthru
    _
  // Predicated region
  $region26: #{petnet_forward.1} parent=0 // pred_check
    _
  $region27: #{petnet_forward.1} parent=0 // pred_check_branch
    %28 = sbr.rel (0) target = $region29
  $region28: #{petnet_forward.1} parent=0 // pred_region
    _
  $region29: #{petnet_forward.1} parent=0 // pred_fallthru
    _
  // Predicated region
  $region30: #{petnet_forward.1} parent=0 // pred_check
    _
  $region31: #{petnet_forward.1} parent=0 // pred_check_branch
    %30 = sbr.rel (0) target = $region33
  $region32: #{petnet_forward.1} parent=0 // pred_region
    _
  $region33: #{petnet_forward.1} parent=0 // pred_fallthru
    _
  %p32 = scmp.eq.s32.totalorder 0, 0
  // Predicated region
  $region34: #{petnet_forward.1} parent=0 // pred_check
    %p33 = pneg %p32
  $region35: #{petnet_forward.1} parent=0 // pred_check_branch
    %35 = sbr.rel (%p33) target = $region37
  $region36: #{petnet_forward.1} parent=0 // pred_region
    %vm36 = vcmask 261120
    %37 = vst.msk [vmem:[#allocation2] sm:$0xff] %vm36, 0.0
  $region37: #{petnet_forward.1} parent=0 // pred_fallthru
    _
  %v38 = vld [vmem:[#allocation2] sm:$0xff]
  %v39 = vld [vmem:[%s0] sm:$0xff]
  %v40 = vld [vmem:[%s0 + $0x8] sm:$0xff]
  %v41 = vld [vmem:[%s0 + $0x10] sm:$0xff]
  %v42 = vld [vmem:[%s0 + $0x18] sm:$0xff]
  %v43 = vld [vmem:[%s0 + $0x20] sm:$0xff]
  %v44 = vld [vmem:[%s0 + $0x28] sm:$0xff]
  %v45 = vpack.c.bf16 %v39, %v39
  %v46 = vpack.c.bf16 %v40, %v40
  %v47 = vpack.c.bf16 %v41, %v41
  %v48 = vpack.c.bf16 %v42, %v42
  %v49 = vpack.c.bf16 %v43, %v43
  %v50 = vpack.c.bf16 %v44, %v44
  %v51 = vld [vmem:[%s1] sm:$0xff]
  %v52 = vld [vmem:[%s1 + $0x8] sm:$0xff]
  %v53 = vld [vmem:[%s1 + $0x10] sm:$0xff]
  %v54 = vld [vmem:[%s1 + $0x18] sm:$0xff]
  %v55 = vld [vmem:[%s1 + $0x20] sm:$0xff]
  %v56 = vld [vmem:[%s1 + $0x28] sm:$0xff]
  %v57 = vld [vmem:[%s1 + $0x30] sm:$0xff]
  %v58 = vld [vmem:[%s1 + $0x38] sm:$0xff]
  %v59 = vld [vmem:[%s1 + $0x40] sm:$0xff]
  %v60 = vld [vmem:[%s1 + $0x48] sm:$0xff]
  %v61 = vld [vmem:[%s1 + $0x50] sm:$0xff]
  %v62 = vld [vmem:[%s1 + $0x58] sm:$0xff]
  %v75 = vunpack.c.l.b16 %v51
  %v76 = vunpack.c.h.b16 %v51
  %v77 = vunpack.c.l.b16 %v52
  %v78 = vunpack.c.h.b16 %v52
  %v79 = vunpack.c.l.b16 %v53
  %v80 = vunpack.c.h.b16 %v53
  %v81 = vunpack.c.l.b16 %v54
  %v82 = vunpack.c.h.b16 %v54
  %v83 = vunpack.c.l.b16 %v55
  %v84 = vunpack.c.h.b16 %v55
  %v85 = vunpack.c.l.b16 %v56
  %v86 = vunpack.c.h.b16 %v56
  %v87 = vunpack.c.l.b16 %v57
  %v88 = vunpack.c.h.b16 %v57
  %v89 = vunpack.c.l.b16 %v58
  %v90 = vunpack.c.h.b16 %v58
  %v91 = vunpack.c.l.b16 %v59
  %v92 = vunpack.c.h.b16 %v59
  %v93 = vunpack.c.l.b16 %v60
  %v94 = vunpack.c.h.b16 %v60
  %v95 = vunpack.c.l.b16 %v61
  %v96 = vunpack.c.h.b16 %v61
  %v97 = vunpack.c.l.b16 %v62
  %v98 = vunpack.c.h.b16 %v62
  %v99 = vpack.c.b16 %v81, %v75
  %v100 = vpack.c.b16 %v82, %v76
  %v101 = vpack.c.b16 %v83, %v77
  %v102 = vpack.c.b16 %v84, %v78
  %v103 = vpack.c.b16 %v85, %v79
  %v104 = vpack.c.b16 %v86, %v80
  %v105 = vpack.c.b16 %v93, %v87
  %v106 = vpack.c.b16 %v94, %v88
  %v107 = vpack.c.b16 %v95, %v89
  %v108 = vpack.c.b16 %v96, %v90
  %v109 = vpack.c.b16 %v97, %v91
  %v110 = vpack.c.b16 %v98, %v92
  %123 = vmatprep.subr.bf16.mxu0 %v100
  %124 = vmatpush1.bf16.xpose.msra.mxu0 %v99
  %125 = vmatprep.subr.bf16.mxu0 %v106
  %126 = vmatpush1.bf16.xpose.msra.mxu0 %v105
  %127 = vmatprep.subr.bf16.mxu0 0
  %128 = vmatpush1.bf16.xpose.msra.mxu0 0
  %129 = vmatprep.subr.bf16.mxu0 0
  %130 = vmatpush1.bf16.xpose.msra.mxu0 0
  %131 = vmatprep.subr.bf16.mxu0 0
  %132 = vmatpush1.bf16.xpose.msra.mxu0 0
  %133 = vmatprep.subr.bf16.mxu0 0
  %134 = vmatpush1.bf16.xpose.msra.mxu0 0
  %135 = vmatprep.subr.bf16.mxu0 0
  %136 = vmatpush1.bf16.xpose.msra.mxu0 0
  %137 = vmatprep.subr.bf16.mxu0 0
  %138 = vmatpush1.bf16.xpose.msra.mxu0 0
  %139 = vmatprep.subr.bf16.mxu0 0
  %140 = vmatpush1.bf16.xpose.msra.mxu0 0
  %141 = vmatprep.subr.bf16.mxu0 0
  %142 = vmatpush1.bf16.xpose.msra.mxu0 0
  %143 = vmatprep.subr.bf16.mxu0 0
  %144 = vmatpush1.bf16.xpose.msra.mxu0 0
  %145 = vmatprep.subr.bf16.mxu0 0
  %146 = vmatpush1.bf16.xpose.msra.mxu0 0
  %147 = vmatprep.subr.bf16.mxu0 0
  %148 = vmatpush1.bf16.xpose.msra.mxu0 0
  %149 = vmatprep.subr.bf16.mxu0 0
  %150 = vmatpush1.bf16.xpose.msra.mxu0 0
  %151 = vmatprep.subr.bf16.mxu0 0
  %152 = vmatpush1.bf16.xpose.msra.mxu0 0
  %153 = vmatprep.subr.bf16.mxu0 0
  %154 = vmatpush1.bf16.xpose.msra.mxu0 0
  %155 = vmatprep.mubr.bf16.mxu0 %v46
  %156 = vmatmul.mubr.bf16.gmra.mrb[0].mxu0 %v45
  %v157 = vpop.f32.mrb[0].mxu0
  %v158 = vadd.f32 0.0, %v157
  %v159 = vpop.f32.mrb[0].mxu0
  %v160 = vpop.f32.mrb[0].mxu0
  %v161 = vpop.f32.mrb[0].mxu0
  %162 = vdwg.mxu0
  %163 = vmatprep.subr.bf16.mxu0 %v102
  %164 = vmatpush1.bf16.xpose.msra.mxu0 %v101
  %165 = vmatprep.subr.bf16.mxu0 %v108
  %166 = vmatpush1.bf16.xpose.msra.mxu0 %v107
  %167 = vmatprep.subr.bf16.mxu0 0
  %168 = vmatpush1.bf16.xpose.msra.mxu0 0
  %169 = vmatprep.subr.bf16.mxu0 0
  %170 = vmatpush1.bf16.xpose.msra.mxu0 0
  %171 = vmatprep.subr.bf16.mxu0 0
  %172 = vmatpush1.bf16.xpose.msra.mxu0 0
  %173 = vmatprep.subr.bf16.mxu0 0
  %174 = vmatpush1.bf16.xpose.msra.mxu0 0
  %175 = vmatprep.subr.bf16.mxu0 0
  %176 = vmatpush1.bf16.xpose.msra.mxu0 0
  %177 = vmatprep.subr.bf16.mxu0 0
  %178 = vmatpush1.bf16.xpose.msra.mxu0 0
  %179 = vmatprep.subr.bf16.mxu0 0
  %180 = vmatpush1.bf16.xpose.msra.mxu0 0
  %181 = vmatprep.subr.bf16.mxu0 0
  %182 = vmatpush1.bf16.xpose.msra.mxu0 0
  %183 = vmatprep.subr.bf16.mxu0 0
  %184 = vmatpush1.bf16.xpose.msra.mxu0 0
  %185 = vmatprep.subr.bf16.mxu0 0
  %186 = vmatpush1.bf16.xpose.msra.mxu0 0
  %187 = vmatprep.subr.bf16.mxu0 0
  %188 = vmatpush1.bf16.xpose.msra.mxu0 0
  %189 = vmatprep.subr.bf16.mxu0 0
  %190 = vmatpush1.bf16.xpose.msra.mxu0 0
  %191 = vmatprep.subr.bf16.mxu0 0
  %192 = vmatpush1.bf16.xpose.msra.mxu0 0
  %193 = vmatprep.subr.bf16.mxu0 0
  %194 = vmatpush1.bf16.xpose.msra.mxu0 0
  %195 = vmatprep.mubr.bf16.mxu0 %v48
  %196 = vmatmul.mubr.bf16.gmra.mrb[0].mxu0 %v47
  %v197 = vpop.f32.mrb[0].mxu0
  %v198 = vadd.f32 %v158, %v197
  %v199 = vpop.f32.mrb[0].mxu0
  %v200 = vpop.f32.mrb[0].mxu0
  %v201 = vpop.f32.mrb[0].mxu0
  %202 = vdwg.mxu0
  %203 = vmatprep.subr.bf16.mxu0 %v104
  %204 = vmatpush1.bf16.xpose.msra.mxu0 %v103
  %205 = vmatprep.subr.bf16.mxu0 %v110
  %206 = vmatpush1.bf16.xpose.msra.mxu0 %v109
  %207 = vmatprep.subr.bf16.mxu0 0
  %208 = vmatpush1.bf16.xpose.msra.mxu0 0
  %209 = vmatprep.subr.bf16.mxu0 0
  %210 = vmatpush1.bf16.xpose.msra.mxu0 0
  %211 = vmatprep.subr.bf16.mxu0 0
  %212 = vmatpush1.bf16.xpose.msra.mxu0 0
  %213 = vmatprep.subr.bf16.mxu0 0
  %214 = vmatpush1.bf16.xpose.msra.mxu0 0
  %215 = vmatprep.subr.bf16.mxu0 0
  %216 = vmatpush1.bf16.xpose.msra.mxu0 0
  %217 = vmatprep.subr.bf16.mxu0 0
  %218 = vmatpush1.bf16.xpose.msra.mxu0 0
  %219 = vmatprep.subr.bf16.mxu0 0
  %220 = vmatpush1.bf16.xpose.msra.mxu0 0
  %221 = vmatprep.subr.bf16.mxu0 0
  %222 = vmatpush1.bf16.xpose.msra.mxu0 0
  %223 = vmatprep.subr.bf16.mxu0 0
  %224 = vmatpush1.bf16.xpose.msra.mxu0 0
  %225 = vmatprep.subr.bf16.mxu0 0
  %226 = vmatpush1.bf16.xpose.msra.mxu0 0
  %227 = vmatprep.subr.bf16.mxu0 0
  %228 = vmatpush1.bf16.xpose.msra.mxu0 0
  %229 = vmatprep.subr.bf16.mxu0 0
  %230 = vmatpush1.bf16.xpose.msra.mxu0 0
  %231 = vmatprep.subr.bf16.mxu0 0
  %232 = vmatpush1.bf16.xpose.msra.mxu0 0
  %233 = vmatprep.subr.bf16.mxu0 0
  %234 = vmatpush1.bf16.xpose.msra.mxu0 0
  %235 = vmatprep.mubr.bf16.mxu0 %v50
  %236 = vmatmul.mubr.bf16.gmra.mrb[0].mxu0 %v49
  %v237 = vpop.f32.mrb[0].mxu0
  %v238 = vadd.f32 %v198, %v237
  %v239 = vpop.f32.mrb[0].mxu0
  %v240 = vpop.f32.mrb[0].mxu0
  %v241 = vpop.f32.mrb[0].mxu0
  %242 = vdwg.mxu0
  %v243 = vadd.f32 %v38, %v238
  %vm244 = vcmask 261120
  %245 = vst.msk [vmem:[#allocation2] sm:$0xff] %vm244, %v243
  // Predicated region
  $region38: #{petnet_forward.1} parent=0 // pred_check
    %p246 = pneg %p32
  $region39: #{petnet_forward.1} parent=0 // pred_check_branch
    %248 = sbr.rel (%p246) target = $region41
  $region40: #{petnet_forward.1} parent=0 // pred_region
    %v249 = vld [vmem:[#allocation2] sm:$0xff]
    %v250 = vld [vmem:[%s2] sm:$0xff]
    %v251 = vld [vmem:[%s3] sm:$0xff]
    %v252 = vld [vmem:[%s3 + $0x8] sm:$0xff]
    %v253 = vld [vmem:[%s3 + $0x10] sm:$0xff]
    %v254 = vld [vmem:[%s3 + $0x18] sm:$0xff]
    %v255 = vld [vmem:[%s4] sm:$0xff]
    %v256 = vld [vmem:[%s4 + $0x8] sm:$0xf]
    %vm257 = vcmask 97280
    %v259 = vsel %vm257, %v250, 0
    %vm261 = vcmask 1043456
    %v263 = vsel %vm261, %v256, 0
    %265 = vmatprep.subr.mxu0 0.0
    %266 = vmatpush1.msra.mxu0 %v255
    %267 = vmatprep.subr.mxu0 0.0
    %268 = vmatpush1.msra.mxu0 %v263
    %269 = vmatprep.subr.mxu0 0.0
    %270 = vmatpush1.msra.mxu0 0.0
    %271 = vmatprep.subr.mxu0 0.0
    %272 = vmatpush1.msra.mxu0 0.0
    %273 = vmatprep.subr.mxu0 0.0
    %274 = vmatpush1.msra.mxu0 0.0
    %275 = vmatprep.subr.mxu0 0.0
    %276 = vmatpush1.msra.mxu0 0.0
    %277 = vmatprep.subr.mxu0 0.0
    %278 = vmatpush1.msra.mxu0 0.0
    %279 = vmatprep.subr.mxu0 0.0
    %280 = vmatpush1.msra.mxu0 0.0
    %281 = vmatprep.subr.mxu0 0.0
    %282 = vmatpush1.msra.mxu0 0.0
    %283 = vmatprep.subr.mxu0 0.0
    %284 = vmatpush1.msra.mxu0 0.0
    %285 = vmatprep.subr.mxu0 0.0
    %286 = vmatpush1.msra.mxu0 0.0
    %287 = vmatprep.subr.mxu0 0.0
    %288 = vmatpush1.msra.mxu0 0.0
    %289 = vmatprep.subr.mxu0 0.0
    %290 = vmatpush1.msra.mxu0 0.0
    %291 = vmatprep.subr.mxu0 0.0
    %292 = vmatpush1.msra.mxu0 0.0
    %293 = vmatprep.subr.mxu0 0.0
    %294 = vmatpush1.msra.mxu0 0.0
    %295 = vmatprep.subr.mxu0 0.0
    %296 = vmatpush1.msra.mxu0 0.0
    %297 = vmatprep.subr.mxu0 0.0
    %298 = vmatpush1.msra.mxu0 0.0
    %299 = vmatprep.subr.mxu0 0.0
    %300 = vmatpush1.msra.mxu0 0.0
    %301 = vmatprep.subr.mxu0 0.0
    %302 = vmatpush1.msra.mxu0 0.0
    %303 = vmatprep.subr.mxu0 0.0
    %304 = vmatpush1.msra.mxu0 0.0
    %305 = vmatprep.subr.mxu0 0.0
    %306 = vmatpush1.msra.mxu0 0.0
    %307 = vmatprep.subr.mxu0 0.0
    %308 = vmatpush1.msra.mxu0 0.0
    %309 = vmatprep.subr.mxu0 0.0
    %310 = vmatpush1.msra.mxu0 0.0
    %311 = vmatprep.subr.mxu0 0.0
    %312 = vmatpush1.msra.mxu0 0.0
    %313 = vmatprep.subr.mxu0 0.0
    %314 = vmatpush1.msra.mxu0 0.0
    %315 = vmatprep.subr.mxu0 0.0
    %316 = vmatpush1.msra.mxu0 0.0
    %317 = vmatprep.subr.mxu0 0.0
    %318 = vmatpush1.msra.mxu0 0.0
    %319 = vmatprep.subr.mxu0 0.0
    %320 = vmatpush1.msra.mxu0 0.0
    %321 = vmatprep.subr.mxu0 0.0
    %322 = vmatpush1.msra.mxu0 0.0
    %323 = vmatprep.subr.mxu0 0.0
    %324 = vmatpush1.msra.mxu0 0.0
    %325 = vmatprep.subr.mxu0 0.0
    %326 = vmatpush1.msra.mxu0 0.0
    %327 = vmatprep.subr.mxu0 0.0
    %328 = vmatpush1.msra.mxu0 0.0
    %329 = vmatprep.mubr.f32.mxu0 0.0
    %330 = vmatmul.mubr.f32.gmra.mrb[0].mxu0 %v259
    %v331 = vpop.f32.mrb[0].mxu0
    %v332 = vadd.f32 0.0, %v331
    %v333 = vpop.f32.mrb[0].mxu0
    %334 = vdwg.mxu0
    %v336 = vsel %vm244, %v249, 0
    %338 = vmatprep.subr.mxu0 0.0
    %339 = vmatpush1.msra.mxu0 %v251
    %340 = vmatprep.subr.mxu0 0.0
    %341 = vmatpush1.msra.mxu0 %v252
    %342 = vmatprep.subr.mxu0 0.0
    %343 = vmatpush1.msra.mxu0 %v253
    %344 = vmatprep.subr.mxu0 0.0
    %345 = vmatpush1.msra.mxu0 %v254
    %346 = vmatprep.subr.mxu0 0.0
    %347 = vmatpush1.msra.mxu0 0.0
    %348 = vmatprep.subr.mxu0 0.0
    %349 = vmatpush1.msra.mxu0 0.0
    %350 = vmatprep.subr.mxu0 0.0
    %351 = vmatpush1.msra.mxu0 0.0
    %352 = vmatprep.subr.mxu0 0.0
    %353 = vmatpush1.msra.mxu0 0.0
    %354 = vmatprep.subr.mxu0 0.0
    %355 = vmatpush1.msra.mxu0 0.0
    %356 = vmatprep.subr.mxu0 0.0
    %357 = vmatpush1.msra.mxu0 0.0
    %358 = vmatprep.subr.mxu0 0.0
    %359 = vmatpush1.msra.mxu0 0.0
    %360 = vmatprep.subr.mxu0 0.0
    %361 = vmatpush1.msra.mxu0 0.0
    %362 = vmatprep.subr.mxu0 0.0
    %363 = vmatpush1.msra.mxu0 0.0
    %364 = vmatprep.subr.mxu0 0.0
    %365 = vmatpush1.msra.mxu0 0.0
    %366 = vmatprep.subr.mxu0 0.0
    %367 = vmatpush1.msra.mxu0 0.0
    %368 = vmatprep.subr.mxu0 0.0
    %369 = vmatpush1.msra.mxu0 0.0
    %370 = vmatprep.subr.mxu0 0.0
    %371 = vmatpush1.msra.mxu0 0.0
    %372 = vmatprep.subr.mxu0 0.0
    %373 = vmatpush1.msra.mxu0 0.0
    %374 = vmatprep.subr.mxu0 0.0
    %375 = vmatpush1.msra.mxu0 0.0
    %376 = vmatprep.subr.mxu0 0.0
    %377 = vmatpush1.msra.mxu0 0.0
    %378 = vmatprep.subr.mxu0 0.0
    %379 = vmatpush1.msra.mxu0 0.0
    %380 = vmatprep.subr.mxu0 0.0
    %381 = vmatpush1.msra.mxu0 0.0
    %382 = vmatprep.subr.mxu0 0.0
    %383 = vmatpush1.msra.mxu0 0.0
    %384 = vmatprep.subr.mxu0 0.0
    %385 = vmatpush1.msra.mxu0 0.0
    %386 = vmatprep.subr.mxu0 0.0
    %387 = vmatpush1.msra.mxu0 0.0
    %388 = vmatprep.subr.mxu0 0.0
    %389 = vmatpush1.msra.mxu0 0.0
    %390 = vmatprep.subr.mxu0 0.0
    %391 = vmatpush1.msra.mxu0 0.0
    %392 = vmatprep.subr.mxu0 0.0
    %393 = vmatpush1.msra.mxu0 0.0
    %394 = vmatprep.subr.mxu0 0.0
    %395 = vmatpush1.msra.mxu0 0.0
    %396 = vmatprep.subr.mxu0 0.0
    %397 = vmatpush1.msra.mxu0 0.0
    %398 = vmatprep.subr.mxu0 0.0
    %399 = vmatpush1.msra.mxu0 0.0
    %400 = vmatprep.subr.mxu0 0.0
    %401 = vmatpush1.msra.mxu0 0.0
    %402 = vmatprep.mubr.f32.mxu0 0.0
    %403 = vmatmul.mubr.f32.gmra.mrb[0].mxu0 %v336
    %v404 = vpop.f32.mrb[0].mxu0
    %v405 = vadd.f32 %v332, %v404
    %v406 = vpop.f32.mrb[0].mxu0
    %407 = vdwg.mxu0
    %v408 = vld [vmem:[%s5] sm:$0x1]
    %v410 = vlaneseq
    %v411 = vshrl.u32 %v410, 7
    %v412 = vsub.s32 0, %v411
    %v413 = vrot.slane %v408, %v412
    %v415 = vadd.f32 %v405, %v413
    %v416 = vmax.f32 %v415, 0.0
    %v417 = vld [vmem:[%s6] sm:$0xff]
    %v418 = vld [vmem:[%s6 + $0x8] sm:$0xff]
    %v419 = vld [vmem:[%s6 + $0x10] sm:$0xff]
    %v420 = vld [vmem:[%s6 + $0x18] sm:$0xff]
    %v421 = vld [vmem:[%s6 + $0x20] sm:$0xff]
    %v422 = vld [vmem:[%s6 + $0x28] sm:$0xff]
    %v423 = vld [vmem:[%s6 + $0x30] sm:$0xff]
    %v424 = vld [vmem:[%s6 + $0x38] sm:$0xff]
    %v425 = vld [vmem:[#allocation3] sm:$0x1]
    %v427 = vlaneseq
    %v428 = vshrl.u32 %v427, 7
    %v429 = vsub.s32 0, %v428
    %v430 = vrot.slane %v425, %v429
    %vm432 = vcmask 523264
    %v434 = vsel %vm432, %v416, 0
    %436 = vmatprep.subr.mxu0 0.0
    %437 = vmatpush1.msra.mxu0 %v417
    %438 = vmatprep.subr.mxu0 0.0
    %439 = vmatpush1.msra.mxu0 %v418
    %440 = vmatprep.subr.mxu0 0.0
    %441 = vmatpush1.msra.mxu0 %v419
    %442 = vmatprep.subr.mxu0 0.0
    %443 = vmatpush1.msra.mxu0 %v420
    %444 = vmatprep.subr.mxu0 0.0
    %445 = vmatpush1.msra.mxu0 %v421
    %446 = vmatprep.subr.mxu0 0.0
    %447 = vmatpush1.msra.mxu0 %v422
    %448 = vmatprep.subr.mxu0 0.0
    %449 = vmatpush1.msra.mxu0 %v423
    %450 = vmatprep.subr.mxu0 0.0
    %451 = vmatpush1.msra.mxu0 %v424
    %452 = vmatprep.subr.mxu0 0.0
    %453 = vmatpush1.msra.mxu0 0.0
    %454 = vmatprep.subr.mxu0 0.0
    %455 = vmatpush1.msra.mxu0 0.0
    %456 = vmatprep.subr.mxu0 0.0
    %457 = vmatpush1.msra.mxu0 0.0
    %458 = vmatprep.subr.mxu0 0.0
    %459 = vmatpush1.msra.mxu0 0.0
    %460 = vmatprep.subr.mxu0 0.0
    %461 = vmatpush1.msra.mxu0 0.0
    %462 = vmatprep.subr.mxu0 0.0
    %463 = vmatpush1.msra.mxu0 0.0
    %464 = vmatprep.subr.mxu0 0.0
    %465 = vmatpush1.msra.mxu0 0.0
    %466 = vmatprep.subr.mxu0 0.0
    %467 = vmatpush1.msra.mxu0 0.0
    %468 = vmatprep.subr.mxu0 0.0
    %469 = vmatpush1.msra.mxu0 0.0
    %470 = vmatprep.subr.mxu0 0.0
    %471 = vmatpush1.msra.mxu0 0.0
    %472 = vmatprep.subr.mxu0 0.0
    %473 = vmatpush1.msra.mxu0 0.0
    %474 = vmatprep.subr.mxu0 0.0
    %475 = vmatpush1.msra.mxu0 0.0
    %476 = vmatprep.subr.mxu0 0.0
    %477 = vmatpush1.msra.mxu0 0.0
    %478 = vmatprep.subr.mxu0 0.0
    %479 = vmatpush1.msra.mxu0 0.0
    %480 = vmatprep.subr.mxu0 0.0
    %481 = vmatpush1.msra.mxu0 0.0
    %482 = vmatprep.subr.mxu0 0.0
    %483 = vmatpush1.msra.mxu0 0.0
    %484 = vmatprep.subr.mxu0 0.0
    %485 = vmatpush1.msra.mxu0 0.0
    %486 = vmatprep.subr.mxu0 0.0
    %487 = vmatpush1.msra.mxu0 0.0
    %488 = vmatprep.subr.mxu0 0.0
    %489 = vmatpush1.msra.mxu0 0.0
    %490 = vmatprep.subr.mxu0 0.0
    %491 = vmatpush1.msra.mxu0 0.0
    %492 = vmatprep.subr.mxu0 0.0
    %493 = vmatpush1.msra.mxu0 0.0
    %494 = vmatprep.subr.mxu0 0.0
    %495 = vmatpush1.msra.mxu0 0.0
    %496 = vmatprep.subr.mxu0 0.0
    %497 = vmatpush1.msra.mxu0 0.0
    %498 = vmatprep.subr.mxu0 0.0
    %499 = vmatpush1.msra.mxu0 0.0
    %500 = vmatprep.mubr.f32.mxu0 0.0
    %501 = vmatmul.mubr.f32.gmra.mrb[0].mxu0 %v434
    %v502 = vpop.f32.mrb[0].mxu0
    %v503 = vadd.f32 %v430, %v502
    %v504 = vpop.f32.mrb[0].mxu0
    %505 = vdwg.mxu0
    %vm506 = vcmask 7168
    %507 = vst.msk [vmem:[%s8] sm:$0xff] %vm506, %v503
  $region41: #{petnet_forward.1} parent=0 // pred_fallthru
    _
  // Predicated region
  $region42: #{petnet_forward.1} parent=0 // pred_check
    _
  $region43: #{petnet_forward.1} parent=0 // pred_check_branch
    %509 = sbr.rel (0) target = $region45
  $region44: #{petnet_forward.1} parent=0 // pred_region
    _
  $region45: #{petnet_forward.1} parent=0 // pred_fallthru
    _
  // Predicated region
  $region46: #{petnet_forward.1} parent=0 // pred_check
    _
  $region47: #{petnet_forward.1} parent=0 // pred_check_branch
    %511 = sbr.rel (0) target = $region49
  $region48: #{petnet_forward.1} parent=0 // pred_region
    _
  $region49: #{petnet_forward.1} parent=0 // pred_fallthru
    _

</llo_original>
